<compile_context>
chip_gen: v7x
topology: tpu7x:2x2x1
jax: 0.10.0
libtpu: 0.0.40
codegen_flags: <defaults>
</compile_context>

<pallas_src>
import jax
import jax.numpy as jnp
from jax import lax
from jax.experimental import pallas as pl
from jax.experimental.pallas import tpu as pltpu

_C = 8.0  # the fixed gating constant `self.c` in the module


def _rglru_kernel(x_mm_ref, x_el_ref, wig_t_ref, wag_t_ref, neg_a_ref,
                  o_ref, h_scr):
    """One (batch, channel-tile, seq-tile) block per grid step.

    x_mm_ref:  (1, TS, D)   input activations, full channel width (matmul contraction)
    x_el_ref:  (1, TS, TD)  input activations, this channel tile (elementwise term)
    wig_t_ref: (D, TD)      input_gate weight slice, pre-transposed (x @ W^T)
    wag_t_ref: (D, TD)      a_gate weight slice, pre-transposed
    neg_a_ref: (1, TD)      precomputed  -c * softplus(a)  tiled over heads, f32
    o_ref:     (1, TS, TD)  output hidden states
    h_scr:     (1, TD) f32  recurrent state carried across seq tiles
    """
    # Zero the carried state at the start of each sequence.
    @pl.when(pl.program_id(2) == 0)
    def _():
        h_scr[...] = jnp.zeros_like(h_scr)

    x_mm = x_mm_ref[0]                                           # (TS, D)

    # Gate projections on the MXU, f32 accumulation.
    gate_x = jax.nn.sigmoid(
        jnp.dot(x_mm, wig_t_ref[...], preferred_element_type=jnp.float32))
    gate_a = jax.nn.sigmoid(
        jnp.dot(x_mm, wag_t_ref[...], preferred_element_type=jnp.float32))

    log_a = neg_a_ref[...] * gate_a                              # (TS, TD)
    a = jnp.exp(log_a)
    # sqrt_bounded_derivative forward is plain sqrt; reuse a*a instead of exp(2*log_a)
    # and clamp at 0 to guard against rounding producing a tiny negative argument.
    mult = jnp.sqrt(jnp.maximum(1.0 - a * a, 0.0))
    b = mult * gate_x * x_el_ref[0].astype(jnp.float32)          # (TS, TD)

    # Vectorized log-depth inclusive scan of h_t = a_t * h_{t-1} + b_t over the tile
    # (Hillis-Steele over the sublane/time axis).  After the loop:
    #   a[t] = prod_{j<=t} a_j ,  b[t] = h_t assuming zero state entering the tile.
    ts, td = a.shape
    row = lax.broadcasted_iota(jnp.int32, (ts, td), 0)
    d = 1
    while d < ts:
        a_sh = jnp.where(row >= d, pltpu.roll(a, shift=d, axis=0), 1.0)
        b_sh = jnp.where(row >= d, pltpu.roll(b, shift=d, axis=0), 0.0)
        b = b + a * b_sh        # combine with the earlier segment (uses old a)
        a = a * a_sh
        d *= 2

    # Fold in the state carried from the previous seq tile and update the carry.
    h = b + a * h_scr[...]                                       # (TS, TD)
    h_scr[...] = h[ts - 1:ts, :]

    # Single dense store for the whole tile.
    o_ref[0] = h.astype(o_ref.dtype)


def rglru_forward(x, w_input_gate, w_a_gate, a_param, n_heads,
                  tok_idx=None, cu_seqlens=None, block_s=None, block_d=None):
    """Pallas RGLRU forward.  x: (B, S, D).  Returns (B, S, D) in x.dtype."""
    del tok_idx, cu_seqlens  # TODO(synk): varlen boundaries not implemented.
    B, S, D = x.shape
    head_dim = a_param.shape[-1]
    assert head_dim * n_heads == D

    # Sequence tile: multiple of 8 sublanes (or the full sequence).
    if block_s is None:
        block_s = S if S <= 256 else 256
        if S % block_s != 0:
            block_s = S
    assert S % block_s == 0
    assert block_s == S or block_s % 8 == 0

    # Channel tile: full D for small models, 512-wide slices otherwise (lets the two
    # v7x TensorCores split the channel dimension and bounds weight-slice VMEM).
    if block_d is None:
        block_d = D if D <= 512 else 512
        if D % block_d != 0:
            block_d = D
    assert D % block_d == 0
    assert block_d == D or block_d % 128 == 0

    n_st = S // block_s
    n_dt = D // block_d

    compute_dtype = x.dtype  # pass bf16 x (+ weights) for the bf16 MXU path

    # Parameter-only math hoisted out of the kernel: -c * softplus(a) tiled over heads.
    neg_a = (-_C * jnp.tile(jax.nn.softplus(a_param.astype(jnp.float32)),
                            n_heads))[None, :]                    # (1, D) f32
    # Pre-transpose so the kernel does x @ W^T as a plain row-major matmul.
    wig_t = jnp.asarray(w_input_gate).astype(compute_dtype).T     # (D, D)
    wag_t = jnp.asarray(w_a_gate).astype(compute_dtype).T         # (D, D)

    return pl.pallas_call(
        _rglru_kernel,
        out_shape=jax.ShapeDtypeStruct((B, S, D), x.dtype),
        grid_spec=pltpu.PrefetchScalarGridSpec(
            num_scalar_prefetch=0,
            grid=(B, n_dt, n_st),
            in_specs=[
                # x, full channel width, for the gate matmuls
                pl.BlockSpec((1, block_s, D), lambda b, dt, st: (b, st, 0)),
                # x, this channel tile, for the elementwise gating term
                pl.BlockSpec((1, block_s, block_d), lambda b, dt, st: (b, st, dt)),
                # weight slices (constant across batch / seq)
                pl.BlockSpec((D, block_d), lambda b, dt, st: (0, dt)),
                pl.BlockSpec((D, block_d), lambda b, dt, st: (0, dt)),
                # -c * softplus(a) slice
                pl.BlockSpec((1, block_d), lambda b, dt, st: (0, dt)),
            ],
            out_specs=pl.BlockSpec((1, block_s, block_d),
                                   lambda b, dt, st: (b, st, dt)),
            scratch_shapes=[pltpu.VMEM((1, block_d), jnp.float32)],
        ),
        compiler_params=pltpu.CompilerParams(
            dimension_semantics=("parallel", "parallel", "arbitrary")),
    )(x, x, wig_t, wag_t, neg_a)


def rglru_ref(x, w_input_gate, w_a_gate, a_param, n_heads):
    """Pure-JAX reference replicating the PyTorch forward (conv_size=None)."""
    B, S, D = x.shape
    gate_x = jax.nn.sigmoid(x @ w_input_gate.T)
    gate_a = jax.nn.sigmoid(x @ w_a_gate.T)
    a_full = jnp.tile(jax.nn.softplus(a_param), n_heads)        # (D,)
    log_a = -_C * gate_a * a_full
    a_t = jnp.exp(log_a)
    b_t = jnp.sqrt(1.0 - jnp.exp(2.0 * log_a)) * gate_x * x

    def step(h, ab):
        a, b = ab
        h = a * h + b
        return h, h

    _, hs = lax.scan(step, jnp.zeros((B, D), x.dtype),
                     (jnp.swapaxes(a_t, 0, 1), jnp.swapaxes(b_t, 0, 1)))
    return jnp.swapaxes(hs, 0, 1)


if __name__ == "__main__":
    # Small shapes consistent with the module: dim = n_heads * head_dim.
    bsz, seqlen = 2, 8
    n_heads, head_dim = 4, 8
    dim = n_heads * head_dim  # 32

    key = jax.random.PRNGKey(0)
    kx, kig, kag, ka, _ = jax.random.split(key, 5)

    x = jax.random.normal(kx, (bsz, seqlen, dim), dtype=jnp.float32)

    # Deterministic parameter init mimicking reset_parameters().
    in_init_std = dim ** (-0.5)
    w_input_gate = jnp.clip(
        in_init_std * jax.random.normal(kig, (dim, dim), dtype=jnp.float32),
        -3 * in_init_std, 3 * in_init_std)
    w_a_gate = jnp.clip(
        in_init_std * jax.random.normal(kag, (dim, dim), dtype=jnp.float32),
        -3 * in_init_std, 3 * in_init_std)
    min_rad, max_rad = 0.9, 0.999
    a_param = 0.5 * jnp.log(
        jax.random.uniform(ka, (head_dim,), dtype=jnp.float32,
                           minval=min_rad ** 2 + 1e-8, maxval=max_rad ** 2 + 1e-8))

    # Accepted-but-ignored args (no varlen boundaries in this synthetic setup).
    tok_idx = jnp.broadcast_to(jnp.arange(seqlen, dtype=jnp.int32), (bsz, seqlen))
    cu_seqlens = jnp.array([0, seqlen], dtype=jnp.int32)

    h = rglru_forward(x, w_input_gate, w_a_gate, a_param, n_heads,
                      tok_idx=tok_idx, cu_seqlens=cu_seqlens)
    h = jax.block_until_ready(h)

    h_ref = rglru_ref(x, w_input_gate, w_a_gate, a_param, n_heads)
    assert h.shape == (bsz, seqlen, dim)
    assert jnp.allclose(h, h_ref, atol=2e-5, rtol=2e-5), "mismatch vs reference"

    print("KERNEL_OK")
</pallas_src>

<mosaic_0001>
module attributes {stable_mosaic.version = 11 : i64} {
  func.func @_rglru_kernel(%arg0: i32, %arg1: i32, %arg2: i32, %arg3: memref<1x8x32xf32, #tpu.memory_space<vmem>>, %arg4: memref<1x8x32xf32, #tpu.memory_space<vmem>>, %arg5: memref<32x32xf32, #tpu.memory_space<vmem>>, %arg6: memref<32x32xf32, #tpu.memory_space<vmem>>, %arg7: memref<1x32xf32, #tpu.memory_space<vmem>>, %arg8: memref<1x8x32xf32, #tpu.memory_space<vmem>>, %arg9: memref<1x32xf32, #tpu.memory_space<vmem>>) attributes {dimension_semantics = [#tpu.dimension_semantics<parallel>, #tpu.dimension_semantics<parallel>, #tpu.dimension_semantics<arbitrary>], iteration_bounds = array<i64: 2, 1, 1>, scalar_prefetch = 0 : i64, scratch_operands = 1 : i64, tpu.core_type = #tpu.core_type<tc>, window_params = [{transform_indices = @transform_0, window_bounds = array<i64: 1, 8, 32>}, {transform_indices = @transform_1, window_bounds = array<i64: 1, 8, 32>}, {transform_indices = @transform_2, window_bounds = array<i64: 32, 32>}, {transform_indices = @transform_3, window_bounds = array<i64: 32, 32>}, {transform_indices = @transform_4, window_bounds = array<i64: 1, 32>}, {transform_indices = @transform_5, window_bounds = array<i64: 1, 8, 32>}]} {
    %c0_i32 = arith.constant 0 : i32
    %0 = arith.cmpi eq, %arg2, %c0_i32 : i32
    %1 = arith.extui %0 : i1 to i32
    %c0_i32_0 = arith.constant 0 : i32
    %2 = arith.cmpi ne, %1, %c0_i32_0 : i32
    scf.if %2 {
      %cst_39 = arith.constant 0.000000e+00 : f32
      %82 = vector.broadcast %cst_39 : f32 to vector<1x32xf32>
      %c0_40 = arith.constant 0 : index
      %c0_41 = arith.constant 0 : index
      %83 = vector.load %arg9[%c0_40, %c0_41] : memref<1x32xf32, #tpu.memory_space<vmem>>, vector<1x32xf32>
      tpu.vector_store %arg9[%c0_40, %c0_41], %82 {strides = array<i32>} : memref<1x32xf32, #tpu.memory_space<vmem>>, vector<1x32xf32>,
    } else {
    }
    %c0 = arith.constant 0 : index
    %c0_1 = arith.constant 0 : index
    %c0_2 = arith.constant 0 : index
    %3 = vector.load %arg3[%c0, %c0_1, %c0_2] : memref<1x8x32xf32, #tpu.memory_space<vmem>>, vector<1x8x32xf32>
    %4 = vector.shape_cast %3 : vector<1x8x32xf32> to vector<8x32xf32>
    %c0_3 = arith.constant 0 : index
    %c0_4 = arith.constant 0 : index
    %5 = vector.load %arg5[%c0_3, %c0_4] : memref<32x32xf32, #tpu.memory_space<vmem>>, vector<32x32xf32>
    %cst = arith.constant dense<0.000000e+00> : vector<8x32xf32>
    %6 = tpu.matmul %4, %5, %cst {dimension_numbers = #tpu.dot_dimension_numbers<[1], [0], [0], [1], [0, 0, 1, 1], [], []>} : vector<8x32xf32>, vector<32x32xf32>, vector<8x32xf32> -> vector<8x32xf32>
    %7 = arith.negf %6 : vector<8x32xf32>
    %8 = math.exp %7 : vector<8x32xf32>
    %cst_5 = arith.constant 1.000000e+00 : f32
    %9 = vector.broadcast %cst_5 : f32 to vector<8x32xf32>
    %10 = arith.addf %9, %8 : vector<8x32xf32>
    %11 = arith.divf %9, %10 : vector<8x32xf32>
    %c0_6 = arith.constant 0 : index
    %c0_7 = arith.constant 0 : index
    %12 = vector.load %arg6[%c0_6, %c0_7] : memref<32x32xf32, #tpu.memory_space<vmem>>, vector<32x32xf32>
    %cst_8 = arith.constant dense<0.000000e+00> : vector<8x32xf32>
    %13 = tpu.matmul %4, %12, %cst_8 {dimension_numbers = #tpu.dot_dimension_numbers<[1], [0], [0], [1], [0, 0, 1, 1], [], []>} : vector<8x32xf32>, vector<32x32xf32>, vector<8x32xf32> -> vector<8x32xf32>
    %14 = arith.negf %13 : vector<8x32xf32>
    %15 = math.exp %14 : vector<8x32xf32>
    %cst_9 = arith.constant 1.000000e+00 : f32
    %16 = vector.broadcast %cst_9 : f32 to vector<8x32xf32>
    %17 = arith.addf %16, %15 : vector<8x32xf32>
    %18 = arith.divf %16, %17 : vector<8x32xf32>
    %c0_10 = arith.constant 0 : index
    %c0_11 = arith.constant 0 : index
    %19 = vector.load %arg7[%c0_10, %c0_11] : memref<1x32xf32, #tpu.memory_space<vmem>>, vector<1x32xf32>
    %20 = vector.broadcast %19 : vector<1x32xf32> to vector<8x32xf32>
    %21 = arith.mulf %20, %18 : vector<8x32xf32>
    %22 = math.exp %21 : vector<8x32xf32>
    %23 = arith.mulf %22, %22 : vector<8x32xf32>
    %cst_12 = arith.constant 1.000000e+00 : f32
    %24 = vector.broadcast %cst_12 : f32 to vector<8x32xf32>
    %25 = arith.subf %24, %23 : vector<8x32xf32>
    %cst_13 = arith.constant 0.000000e+00 : f32
    %26 = vector.broadcast %cst_13 : f32 to vector<8x32xf32>
    %27 = arith.maximumf %25, %26 : vector<8x32xf32>
    %28 = math.sqrt %27 : vector<8x32xf32>
    %29 = arith.mulf %28, %11 : vector<8x32xf32>
    %c0_14 = arith.constant 0 : index
    %c0_15 = arith.constant 0 : index
    %c0_16 = arith.constant 0 : index
    %30 = vector.load %arg4[%c0_14, %c0_15, %c0_16] : memref<1x8x32xf32, #tpu.memory_space<vmem>>, vector<1x8x32xf32>
    %31 = vector.shape_cast %30 : vector<1x8x32xf32> to vector<8x32xf32>
    %32 = arith.mulf %29, %31 : vector<8x32xf32>
    %33 = tpu.iota {dimensions = array<i32: 0>} : vector<8x32xi32>
    %c1_i32 = arith.constant 1 : i32
    %34 = vector.broadcast %c1_i32 : i32 to vector<8x32xi32>
    %35 = arith.cmpi sge, %33, %34 : vector<8x32xi32>
    %c1_i32_17 = arith.constant 1 : i32
    %36 = tpu.dynamic_rotate %22 by %c1_i32_17 dim 0 : vector<8x32xf32>, i32 -> vector<8x32xf32>
    %cst_18 = arith.constant 1.000000e+00 : f32
    %37 = vector.broadcast %cst_18 : f32 to vector<8x32xf32>
    %38 = arith.select %35, %36, %37 : vector<8x32xi1>, vector<8x32xf32>
    %c1_i32_19 = arith.constant 1 : i32
    %39 = vector.broadcast %c1_i32_19 : i32 to vector<8x32xi32>
    %40 = arith.cmpi sge, %33, %39 : vector<8x32xi32>
    %c1_i32_20 = arith.constant 1 : i32
    %41 = tpu.dynamic_rotate %32 by %c1_i32_20 dim 0 : vector<8x32xf32>, i32 -> vector<8x32xf32>
    %cst_21 = arith.constant 0.000000e+00 : f32
    %42 = vector.broadcast %cst_21 : f32 to vector<8x32xf32>
    %43 = arith.select %40, %41, %42 : vector<8x32xi1>, vector<8x32xf32>
    %44 = arith.mulf %22, %43 : vector<8x32xf32>
    %45 = arith.addf %32, %44 : vector<8x32xf32>
    %46 = arith.mulf %22, %38 : vector<8x32xf32>
    %c2_i32 = arith.constant 2 : i32
    %47 = vector.broadcast %c2_i32 : i32 to vector<8x32xi32>
    %48 = arith.cmpi sge, %33, %47 : vector<8x32xi32>
    %c2_i32_22 = arith.constant 2 : i32
    %49 = tpu.dynamic_rotate %46 by %c2_i32_22 dim 0 : vector<8x32xf32>, i32 -> vector<8x32xf32>
    %cst_23 = arith.constant 1.000000e+00 : f32
    %50 = vector.broadcast %cst_23 : f32 to vector<8x32xf32>
    %51 = arith.select %48, %49, %50 : vector<8x32xi1>, vector<8x32xf32>
    %c2_i32_24 = arith.constant 2 : i32
    %52 = vector.broadcast %c2_i32_24 : i32 to vector<8x32xi32>
    %53 = arith.cmpi sge, %33, %52 : vector<8x32xi32>
    %c2_i32_25 = arith.constant 2 : i32
    %54 = tpu.dynamic_rotate %45 by %c2_i32_25 dim 0 : vector<8x32xf32>, i32 -> vector<8x32xf32>
    %cst_26 = arith.constant 0.000000e+00 : f32
    %55 = vector.broadcast %cst_26 : f32 to vector<8x32xf32>
    %56 = arith.select %53, %54, %55 : vector<8x32xi1>, vector<8x32xf32>
    %57 = arith.mulf %46, %56 : vector<8x32xf32>
    %58 = arith.addf %45, %57 : vector<8x32xf32>
    %59 = arith.mulf %46, %51 : vector<8x32xf32>
    %c4_i32 = arith.constant 4 : i32
    %60 = vector.broadcast %c4_i32 : i32 to vector<8x32xi32>
    %61 = arith.cmpi sge, %33, %60 : vector<8x32xi32>
    %c4_i32_27 = arith.constant 4 : i32
    %62 = tpu.dynamic_rotate %59 by %c4_i32_27 dim 0 : vector<8x32xf32>, i32 -> vector<8x32xf32>
    %cst_28 = arith.constant 1.000000e+00 : f32
    %63 = vector.broadcast %cst_28 : f32 to vector<8x32xf32>
    %64 = arith.select %61, %62, %63 : vector<8x32xi1>, vector<8x32xf32>
    %c4_i32_29 = arith.constant 4 : i32
    %65 = vector.broadcast %c4_i32_29 : i32 to vector<8x32xi32>
    %66 = arith.cmpi sge, %33, %65 : vector<8x32xi32>
    %c4_i32_30 = arith.constant 4 : i32
    %67 = tpu.dynamic_rotate %58 by %c4_i32_30 dim 0 : vector<8x32xf32>, i32 -> vector<8x32xf32>
    %cst_31 = arith.constant 0.000000e+00 : f32
    %68 = vector.broadcast %cst_31 : f32 to vector<8x32xf32>
    %69 = arith.select %66, %67, %68 : vector<8x32xi1>, vector<8x32xf32>
    %70 = arith.mulf %59, %69 : vector<8x32xf32>
    %71 = arith.addf %58, %70 : vector<8x32xf32>
    %72 = arith.mulf %59, %64 : vector<8x32xf32>
    %c0_32 = arith.constant 0 : index
    %c0_33 = arith.constant 0 : index
    %73 = vector.load %arg9[%c0_32, %c0_33] : memref<1x32xf32, #tpu.memory_space<vmem>>, vector<1x32xf32>
    %74 = vector.broadcast %73 : vector<1x32xf32> to vector<8x32xf32>
    %75 = arith.mulf %72, %74 : vector<8x32xf32>
    %76 = arith.addf %71, %75 : vector<8x32xf32>
    %77 = vector.extract_strided_slice %76 {offsets = [7, 0], sizes = [1, 32], strides = [1, 1]} : vector<8x32xf32> to vector<1x32xf32>
    %c0_34 = arith.constant 0 : index
    %c0_35 = arith.constant 0 : index
    %78 = vector.load %arg9[%c0_34, %c0_35] : memref<1x32xf32, #tpu.memory_space<vmem>>, vector<1x32xf32>
    tpu.vector_store %arg9[%c0_34, %c0_35], %77 {strides = array<i32>} : memref<1x32xf32, #tpu.memory_space<vmem>>, vector<1x32xf32>,
    %c0_36 = arith.constant 0 : index
    %c0_37 = arith.constant 0 : index
    %c0_38 = arith.constant 0 : index
    %79 = vector.load %arg8[%c0_36, %c0_37, %c0_38] : memref<1x8x32xf32, #tpu.memory_space<vmem>>, vector<1x8x32xf32>
    %80 = vector.shape_cast %79 : vector<1x8x32xf32> to vector<8x32xf32>
    %81 = vector.shape_cast %76 : vector<8x32xf32> to vector<1x8x32xf32>
    tpu.vector_store %arg8[%c0_36, %c0_37, %c0_38], %81 {strides = array<i32>} : memref<1x8x32xf32, #tpu.memory_space<vmem>>, vector<1x8x32xf32>,
    return
  }
  func.func @transform_0(%arg0: i32, %arg1: i32, %arg2: i32) -> (i32, i32, i32) {
    %c0_i32 = arith.constant 0 : i32
    %c0_i32_0 = arith.constant 0 : i32
    return %arg0, %arg2, %c0_i32 : i32, i32, i32
  }
  func.func @transform_1(%arg0: i32, %arg1: i32, %arg2: i32) -> (i32, i32, i32) {
    %c0_i32 = arith.constant 0 : i32
    return %arg0, %arg2, %arg1 : i32, i32, i32
  }
  func.func @transform_2(%arg0: i32, %arg1: i32, %arg2: i32) -> (i32, i32) {
    %c0_i32 = arith.constant 0 : i32
    %c0_i32_0 = arith.constant 0 : i32
    return %c0_i32, %arg1 : i32, i32
  }
  func.func @transform_3(%arg0: i32, %arg1: i32, %arg2: i32) -> (i32, i32) {
    %c0_i32 = arith.constant 0 : i32
    %c0_i32_0 = arith.constant 0 : i32
    return %c0_i32, %arg1 : i32, i32
  }
  func.func @transform_4(%arg0: i32, %arg1: i32, %arg2: i32) -> (i32, i32) {
    %c0_i32 = arith.constant 0 : i32
    %c0_i32_0 = arith.constant 0 : i32
    return %c0_i32, %arg1 : i32, i32
  }
  func.func @transform_5(%arg0: i32, %arg1: i32, %arg2: i32) -> (i32, i32, i32) {
    %c0_i32 = arith.constant 0 : i32
    return %arg0, %arg2, %arg1 : i32, i32, i32
  }
}

</mosaic_0001>

<llo_original>
// kernel: tpu_custom_call.1
$region0: #{tpu_custom_call.1}
  #allocation0 [shape = 'u32[]', space=smem, size = 0x4, offset = 0x4, fixed_abs, tag = 'smem constant byte address 0x4 - core index']
  #allocation1 [shape = 'u32[144,128]{1,0:T(1,128)}', space=vmem, size = 0x12000, scoped, tag = 'internal scratch']
  #allocation2 [shape = 'f32[1,32]{1,0:T(1,128)}', space=vmem, size = 0x200, scoped, tag = 'scratch operand']
  %s0 = inlined_call_operand.hbm [shape: f32[2,8,32], index: 0, kind: input, shape index: {}]
  %s1 = inlined_call_operand.hbm [shape: f32[2,8,32], index: 1, kind: input, shape index: {}]
  %s2 = inlined_call_operand.hbm [shape: f32[32,32], index: 2, kind: input, shape index: {}]
  %s3 = inlined_call_operand.hbm [shape: f32[32,32], index: 3, kind: input, shape index: {}]
  %s4 = inlined_call_operand.vmem [shape: f32[1,32], index: 4, kind: input, shape index: {}]
  %s5 = inlined_call_operand.hbm [shape: f32[2,8,32], index: 5, kind: output, shape index: {}]
  %s6 = sld [smem:[#allocation0]]
  $region73: #{tpu_custom_call.1} parent=0
    _
  %s8 = ssub.s32 1, %s6
  %s9 = scalar_select 0, %s8, %s6
  $region1: #{tpu_custom_call.1} parent=0
    #allocation3 [shape = 'u8[8192]{0}', space=vmem, size = 0x2000, scoped, tag = 'input window, operand 0']
    #allocation4 [shape = 's32[2]{0}', space=sflag, size = 0x8, scoped, tag = 'scoped memory for tpu_custom_call.1']
    #allocation5 [shape = 's32[2]{0}', space=sflag, size = 0x8, scoped, tag = 'scoped memory for tpu_custom_call.1']
    #allocation6 [shape = 'u8[8192]{0}', space=vmem, size = 0x2000, scoped, tag = 'input window, operand 1']
    #allocation7 [shape = 's32[2]{0}', space=sflag, size = 0x8, scoped, tag = 'scoped memory for tpu_custom_call.1']
    #allocation8 [shape = 'u8[16384]{0}', space=vmem, size = 0x4000, scoped, tag = 'input window, operand 2, single buffered']
    #allocation9 [shape = 'u8[16384]{0}', space=vmem, size = 0x4000, scoped, tag = 'input window, operand 3, single buffered']
    #allocation10 [shape = 's32[1]{0}', space=sflag, size = 0x4, scoped, tag = 'scoped memory for tpu_custom_call.1']
    #allocation11 [shape = 'u8[8192]{0}', space=vmem, size = 0x2000, scoped, tag = 'output window, operand 0']
    %10 = vsyncpa [#allocation4], 0
    %s11 = scalar_lea.sflag [#allocation4], 1
    %12 = vsyncpa %s11, 0
    %13 = vsyncpa [#allocation7], 0
    %s14 = scalar_lea.sflag [#allocation7], 1
    %15 = vsyncpa %s14, 0
    %16 = vsyncpa [#allocation10], 0
    %17 = vsyncpa [#allocation5], 0
    %s18 = scalar_lea.sflag [#allocation5], 1
    %19 = vsyncpa %s18, 0
    loop: start=0, step=1, limit=4
    $region2: #{tpu_custom_call.1} parent=1 // loop_pre_header
      _
    $region3: #{tpu_custom_call.1} parent=1 // loop_header
      %s21 = sphi 0, %s25
      %p22 = scmp.ge.s32.totalorder %s21, 4
      %s28 = sphi 0, %s47
      %s29 = sphi 0, %s43
      %s30 = sphi 0, %s39
      %s31 = sphi 0, %s28
      %s32 = sphi 0, %s29
      %s33 = sphi 0, %s30
      %s34 = sphi 0, %s31
      %s35 = sphi 0, %s32
      %s36 = sphi 0, %s33
      %s52 = sphi 0, %s54
      %s55 = sphi 0, %s52
      %s56 = sphi 0, %s55
      %s72 = sphi 0, %s56
      %s82 = sphi 0, %s84
      %s85 = sphi 0, %s82
      %s86 = sphi 0, %s85
      %s102 = sphi 0, %s86
      %s108 = sphi 0, %s110
      %s111 = sphi 0, %s108
      %s112 = sphi 0, %s111
      %s128 = sphi 0, %s112
      %s134 = sphi 0, %s136
      %s137 = sphi 0, %s134
      %s138 = sphi 0, %s137
      %s154 = sphi 0, %s138
      %s160 = sphi 0, %s162
      %s163 = sphi 0, %s160
      %s164 = sphi 0, %s163
      %s180 = sphi 0, %s164
      %s190 = sphi 0, %s192
      %s193 = sphi 0, %s190
      %s194 = sphi 0, %s193
      %s210 = sphi 0, %s194
    $region4: #{tpu_custom_call.1} parent=1 // loop_header_branch
      %24 = sbr.rel (%p22) target = $region8
    $region5: #{tpu_custom_call.1} parent=1 // loop_body
      %s26 = ssub.s32 %s21, 1
      %s27 = ssub.s32 %s21, 2
      %s37 = sadd.s32 1, %s30
      %p38 = scmp.ge.s32.totalorder %s37, 1
      %s39 = scalar_select %p38, 0, %s37
      %s40 = sadd.s32 1, %s29
      %s41 = scalar_select %p38, %s40, %s29
      %p42 = scmp.ge.s32.totalorder %s41, 1
      %s43 = scalar_select %p42, 0, %s41
      %s44 = sadd.s32 1, %s28
      %s45 = scalar_select %p42, %s44, %s28
      %p46 = scmp.ge.s32.totalorder %s45, 2
      %s47 = scalar_select %p46, 0, %s45
      %s48 = ssub.s32 %s28, %s47
      %s49 = ssub.s32 %s30, %s39
      %s50 = sor.u32 %s48, %s49
      %p51 = scmp.eq.s32.totalorder %s50, 0
      %s53 = sadd.s32 %s52, 1
      %s54 = scalar_select %p51, %s52, %s53
      %p57 = pneg %p51
      %p58 = scmp.eq.s32.totalorder %s21, 1
      %p59 = por %p57, %p58
      %p60 = scmp.ne.s32.totalorder %s52, %s55
      %p61 = scmp.eq.s32.totalorder %s21, 0
      %p62 = por %p60, %p61
      %p63 = scmp.ne.s32.totalorder %s52, %s55
      %p64 = scmp.eq.s32.totalorder %s26, 1
      %p65 = por %p63, %p64
      %p66 = scmp.ne.s32.totalorder %s55, %s56
      %p67 = scmp.eq.s32.totalorder %s26, 0
      %p68 = por %p66, %p67
      %p69 = scmp.ne.s32.totalorder %s55, %s56
      %p70 = scmp.eq.s32.totalorder %s27, 1
      %p71 = por %p69, %p70
      %p73 = scmp.ne.s32.totalorder %s56, %s72
      %p74 = scmp.eq.s32.totalorder %s27, 0
      %p75 = por %p73, %p74
      %s76 = ssub.s32 %s28, %s47
      %s77 = ssub.s32 %s30, %s39
      %s78 = sor.u32 %s76, %s77
      %s79 = ssub.s32 %s29, %s43
      %s80 = sor.u32 %s78, %s79
      %p81 = scmp.eq.s32.totalorder %s80, 0
      %s83 = sadd.s32 %s82, 1
      %s84 = scalar_select %p81, %s82, %s83
      %p87 = pneg %p81
      %p88 = scmp.eq.s32.totalorder %s21, 1
      %p89 = por %p87, %p88
      %p90 = scmp.ne.s32.totalorder %s82, %s85
      %p91 = scmp.eq.s32.totalorder %s21, 0
      %p92 = por %p90, %p91
      %p93 = scmp.ne.s32.totalorder %s82, %s85
      %p94 = scmp.eq.s32.totalorder %s26, 1
      %p95 = por %p93, %p94
      %p96 = scmp.ne.s32.totalorder %s85, %s86
      %p97 = scmp.eq.s32.totalorder %s26, 0
      %p98 = por %p96, %p97
      %p99 = scmp.ne.s32.totalorder %s85, %s86
      %p100 = scmp.eq.s32.totalorder %s27, 1
      %p101 = por %p99, %p100
      %p103 = scmp.ne.s32.totalorder %s86, %s102
      %p104 = scmp.eq.s32.totalorder %s27, 0
      %p105 = por %p103, %p104
      %s106 = ssub.s32 %s29, %s43
      %p107 = scmp.eq.s32.totalorder %s106, 0
      %s109 = sadd.s32 %s108, 1
      %s110 = scalar_select %p107, %s108, %s109
      %p113 = pneg %p107
      %p114 = scmp.eq.s32.totalorder %s21, 1
      %p115 = por %p113, %p114
      %p116 = scmp.ne.s32.totalorder %s108, %s111
      %p117 = scmp.eq.s32.totalorder %s21, 0
      %p118 = por %p116, %p117
      %p119 = scmp.ne.s32.totalorder %s108, %s111
      %p120 = scmp.eq.s32.totalorder %s26, 1
      %p121 = por %p119, %p120
      %p122 = scmp.ne.s32.totalorder %s111, %s112
      %p123 = scmp.eq.s32.totalorder %s26, 0
      %p124 = por %p122, %p123
      %p125 = scmp.ne.s32.totalorder %s111, %s112
      %p126 = scmp.eq.s32.totalorder %s27, 1
      %p127 = por %p125, %p126
      %p129 = scmp.ne.s32.totalorder %s112, %s128
      %p130 = scmp.eq.s32.totalorder %s27, 0
      %p131 = por %p129, %p130
      %s132 = ssub.s32 %s29, %s43
      %p133 = scmp.eq.s32.totalorder %s132, 0
      %s135 = sadd.s32 %s134, 1
      %s136 = scalar_select %p133, %s134, %s135
      %p139 = pneg %p133
      %p140 = scmp.eq.s32.totalorder %s21, 1
      %p141 = por %p139, %p140
      %p142 = scmp.ne.s32.totalorder %s134, %s137
      %p143 = scmp.eq.s32.totalorder %s21, 0
      %p144 = por %p142, %p143
      %p145 = scmp.ne.s32.totalorder %s134, %s137
      %p146 = scmp.eq.s32.totalorder %s26, 1
      %p147 = por %p145, %p146
      %p148 = scmp.ne.s32.totalorder %s137, %s138
      %p149 = scmp.eq.s32.totalorder %s26, 0
      %p150 = por %p148, %p149
      %p151 = scmp.ne.s32.totalorder %s137, %s138
      %p152 = scmp.eq.s32.totalorder %s27, 1
      %p153 = por %p151, %p152
      %p155 = scmp.ne.s32.totalorder %s138, %s154
      %p156 = scmp.eq.s32.totalorder %s27, 0
      %p157 = por %p155, %p156
      %s158 = ssub.s32 %s29, %s43
      %p159 = scmp.eq.s32.totalorder %s158, 0
      %s161 = sadd.s32 %s160, 1
      %s162 = scalar_select %p159, %s160, %s161
      %p165 = pneg %p159
      %p166 = scmp.eq.s32.totalorder %s21, 1
      %p167 = por %p165, %p166
      %p168 = scmp.ne.s32.totalorder %s160, %s163
      %p169 = scmp.eq.s32.totalorder %s21, 0
      %p170 = por %p168, %p169
      %p171 = scmp.ne.s32.totalorder %s160, %s163
      %p172 = scmp.eq.s32.totalorder %s26, 1
      %p173 = por %p171, %p172
      %p174 = scmp.ne.s32.totalorder %s163, %s164
      %p175 = scmp.eq.s32.totalorder %s26, 0
      %p176 = por %p174, %p175
      %p177 = scmp.ne.s32.totalorder %s163, %s164
      %p178 = scmp.eq.s32.totalorder %s27, 1
      %p179 = por %p177, %p178
      %p181 = scmp.ne.s32.totalorder %s164, %s180
      %p182 = scmp.eq.s32.totalorder %s27, 0
      %p183 = por %p181, %p182
      %s184 = ssub.s32 %s28, %s47
      %s185 = ssub.s32 %s30, %s39
      %s186 = sor.u32 %s184, %s185
      %s187 = ssub.s32 %s29, %s43
      %s188 = sor.u32 %s186, %s187
      %p189 = scmp.eq.s32.totalorder %s188, 0
      %s191 = sadd.s32 %s190, 1
      %s192 = scalar_select %p189, %s190, %s191
      %p195 = pneg %p189
      %p196 = scmp.eq.s32.totalorder %s21, 1
      %p197 = por %p195, %p196
      %p198 = scmp.ne.s32.totalorder %s190, %s193
      %p199 = scmp.eq.s32.totalorder %s21, 0
      %p200 = por %p198, %p199
      %p201 = scmp.ne.s32.totalorder %s190, %s193
      %p202 = scmp.eq.s32.totalorder %s26, 1
      %p203 = por %p201, %p202
      %p204 = scmp.ne.s32.totalorder %s193, %s194
      %p205 = scmp.eq.s32.totalorder %s26, 0
      %p206 = por %p204, %p205
      %p207 = scmp.ne.s32.totalorder %s193, %s194
      %p208 = scmp.eq.s32.totalorder %s27, 1
      %p209 = por %p207, %p208
      %p211 = scmp.ne.s32.totalorder %s194, %s210
      %p212 = scmp.eq.s32.totalorder %s27, 0
      %p213 = por %p211, %p212
      %p214 = scmp.le.s32.totalorder 1, %s21
      %p215 = scmp.lt.s32.totalorder %s21, 3
      %p216 = pnand %p214, %p215
      %p217 = pneg %p216
      // Predicated region
      $region9: #{tpu_custom_call.1} parent=5 // pred_check
        _
      $region10: #{tpu_custom_call.1} parent=5 // pred_check_branch
        %219 = sbr.rel (%p216) target = $region12
      $region11: #{tpu_custom_call.1} parent=5 // pred_region
        %s220 = ssub.s32 %s21, 1
        // Predicated region
        $region13: #{tpu_custom_call.1} parent=11 // pred_check
          %p221 = pneg %p124
        $region14: #{tpu_custom_call.1} parent=11 // pred_check_branch
          %223 = sbr.rel (%p221) target = $region16
        $region15: #{tpu_custom_call.1} parent=11 // pred_region
          %s225 = ssub.s32 512, 512
          %226 = vsyncadd [#allocation7], %s225
          %s227 = smul.addr %s32, 128
          %s228 = scalar_lea.hbm %s2, %s227
          %s229 = sshll.u32 [#allocation8], 4
          %s230 = int_to_ptr.vmem [resolvable:$true] %s229
          %235 = dma.hbm_to_vmem [thread:$0]  %s228, 512, %s230, [#allocation7], 128, 128, 8
        $region16: #{tpu_custom_call.1} parent=11 // pred_fallthru
          _
        // Predicated region
        $region17: #{tpu_custom_call.1} parent=11 // pred_check
          %p236 = pneg %p150
        $region18: #{tpu_custom_call.1} parent=11 // pred_check_branch
          %238 = sbr.rel (%p236) target = $region20
        $region19: #{tpu_custom_call.1} parent=11 // pred_region
          %s240 = ssub.s32 512, 512
          %241 = vsyncadd [#allocation10], %s240
          %s242 = smul.addr %s32, 128
          %s243 = scalar_lea.hbm %s3, %s242
          %s244 = sshll.u32 [#allocation9], 4
          %s245 = int_to_ptr.vmem [resolvable:$true] %s244
          %250 = dma.hbm_to_vmem [thread:$0]  %s243, 512, %s245, [#allocation10], 128, 128, 8
        $region20: #{tpu_custom_call.1} parent=11 // pred_fallthru
          _
        // Predicated region
        $region21: #{tpu_custom_call.1} parent=11 // pred_check
          %p251 = pneg %p176
        $region22: #{tpu_custom_call.1} parent=11 // pred_check_branch
          %253 = sbr.rel (%p251) target = $region24
        $region23: #{tpu_custom_call.1} parent=11 // pred_region
          %p254 = scmp.lt.s32.totalorder %s32, 0
          %s255 = scalar_select %p254, %s32, 0
          %s256 = scalar_lea.vmem %s4, %s255
        $region24: #{tpu_custom_call.1} parent=11 // pred_fallthru
          _
      $region12: #{tpu_custom_call.1} parent=5 // pred_fallthru
        _
      %p257 = scmp.lt.s32.totalorder %s21, 2
      // Predicated region
      $region25: #{tpu_custom_call.1} parent=5 // pred_check
        %p258 = pneg %p257
      $region26: #{tpu_custom_call.1} parent=5 // pred_check_branch
        %260 = sbr.rel (%p258) target = $region28
      $region27: #{tpu_custom_call.1} parent=5 // pred_region
        // Predicated region
        $region29: #{tpu_custom_call.1} parent=27 // pred_check
          %p261 = pneg %p62
        $region30: #{tpu_custom_call.1} parent=27 // pred_check_branch
          %263 = sbr.rel (%p261) target = $region32
        $region31: #{tpu_custom_call.1} parent=27 // pred_region
          %s264 = sand.u32 %s52, 1
          %s265 = scalar_lea.sflag [#allocation4], %s264
          %s266 = sand.u32 %s52, 1
          %s267 = smul.addr %s266, 8
          %s268 = scalar_lea.vmem [#allocation3], %s267
          %s270 = ssub.s32 128, 128
          %271 = vsyncadd %s265, %s270
          %s272 = sadd.s32 %s30, %s28
          %s273 = smul.addr %s272, 128
          %s274 = scalar_lea.hbm %s0, %s273
          %s276 = sshll.u32 %s268, 4
          %s277 = int_to_ptr.vmem [resolvable:$true] %s276
          %279 = dma.hbm_to_vmem [thread:$0]  %s274, 128, %s277, %s265
        $region32: #{tpu_custom_call.1} parent=27 // pred_fallthru
          _
        // Predicated region
        $region33: #{tpu_custom_call.1} parent=27 // pred_check
          %p280 = pneg %p92
        $region34: #{tpu_custom_call.1} parent=27 // pred_check_branch
          %282 = sbr.rel (%p280) target = $region36
        $region35: #{tpu_custom_call.1} parent=27 // pred_region
          %s283 = sand.u32 %s21, 1
          %s284 = scalar_lea.sflag [#allocation7], %s283
          %s285 = sand.u32 %s82, 1
          %s286 = smul.addr %s285, 8
          %s287 = scalar_lea.vmem [#allocation6], %s286
          %s289 = ssub.s32 128, 128
          %290 = vsyncadd %s284, %s289
          %s291 = sadd.s32 %s29, %s30
          %s292 = sadd.s32 %s291, %s28
          %s293 = smul.addr %s292, 128
          %s294 = scalar_lea.hbm %s1, %s293
          %s296 = sshll.u32 %s287, 4
          %s297 = int_to_ptr.vmem [resolvable:$true] %s296
          %299 = dma.hbm_to_vmem [thread:$0]  %s294, 128, %s297, %s284
        $region36: #{tpu_custom_call.1} parent=27 // pred_fallthru
          _
      $region28: #{tpu_custom_call.1} parent=5 // pred_fallthru
        _
      %p300 = scmp.le.s32.totalorder 1, %s21
      %p301 = scmp.lt.s32.totalorder %s21, 3
      %p302 = pnand %p300, %p301
      %p303 = pneg %p302
      // Predicated region
      $region37: #{tpu_custom_call.1} parent=5 // pred_check
        _
      $region38: #{tpu_custom_call.1} parent=5 // pred_check_branch
        %305 = sbr.rel (%p302) target = $region40
      $region39: #{tpu_custom_call.1} parent=5 // pred_region
        %s306 = ssub.s32 %s21, 1
        %s307 = sand.u32 %s55, 1
        %s308 = scalar_lea.sflag [#allocation4], %s307
        %s309 = sand.u32 %s55, 1
        %s310 = smul.addr %s309, 8
        %s311 = scalar_lea.vmem [#allocation3], %s310
        // Predicated region
        $region41: #{tpu_custom_call.1} parent=39 // pred_check
          %p312 = pneg %p68
        $region42: #{tpu_custom_call.1} parent=39 // pred_check_branch
          %314 = sbr.rel (%p312) target = $region44
        $region43: #{tpu_custom_call.1} parent=39 // pred_region
          %315 = dma.done %s308, 128
        $region44: #{tpu_custom_call.1} parent=39 // pred_fallthru
          _
        %s316 = sand.u32 %s26, 1
        %s317 = scalar_lea.sflag [#allocation7], %s316
        %s318 = sand.u32 %s85, 1
        %s319 = smul.addr %s318, 8
        %s320 = scalar_lea.vmem [#allocation6], %s319
        // Predicated region
        $region45: #{tpu_custom_call.1} parent=39 // pred_check
          %p321 = pneg %p98
        $region46: #{tpu_custom_call.1} parent=39 // pred_check_branch
          %323 = sbr.rel (%p321) target = $region48
        $region47: #{tpu_custom_call.1} parent=39 // pred_region
          %324 = dma.done %s317, 128
        $region48: #{tpu_custom_call.1} parent=39 // pred_fallthru
          _
        // Predicated region
        $region49: #{tpu_custom_call.1} parent=39 // pred_check
          %p325 = pneg %p124
        $region50: #{tpu_custom_call.1} parent=39 // pred_check_branch
          %327 = sbr.rel (%p325) target = $region52
        $region51: #{tpu_custom_call.1} parent=39 // pred_region
          %328 = dma.done [#allocation7], 512
        $region52: #{tpu_custom_call.1} parent=39 // pred_fallthru
          _
        // Predicated region
        $region53: #{tpu_custom_call.1} parent=39 // pred_check
          %p329 = pneg %p150
        $region54: #{tpu_custom_call.1} parent=39 // pred_check_branch
          %331 = sbr.rel (%p329) target = $region56
        $region55: #{tpu_custom_call.1} parent=39 // pred_region
          %332 = dma.done [#allocation10], 512
        $region56: #{tpu_custom_call.1} parent=39 // pred_fallthru
          _
        %s333 = sand.u32 %s55, 1
        %s334 = scalar_lea.sflag [#allocation4], %s333
        %s335 = sand.u32 %s55, 1
        %s336 = smul.addr %s335, 8
        %s337 = scalar_lea.vmem [#allocation3], %s336
        %p338 = pneg %p68
        %p339 = pneg %p65
        %s340 = sand.u32 %s26, 1
        %s341 = scalar_lea.sflag [#allocation7], %s340
        %s342 = sand.u32 %s85, 1
        %s343 = smul.addr %s342, 8
        %s344 = scalar_lea.vmem [#allocation6], %s343
        %p345 = pneg %p98
        %p346 = pneg %p95
        %p347 = pneg %p124
        %p348 = pneg %p121
        %p349 = pneg %p150
        %p350 = pneg %p147
        %p351 = scmp.lt.s32.totalorder %s32, 0
        %s352 = scalar_select %p351, %s32, 0
        %s353 = scalar_lea.vmem %s4, %s352
        %p354 = pneg %p176
        %p355 = pneg %p173
        %p356 = pneg %p206
        %p357 = pneg %p203
        %s358 = sand.u32 %s193, 1
        %s359 = scalar_lea.sflag [#allocation5], %s358
        %s360 = sand.u32 %s193, 1
        %s361 = smul.addr %s360, 8
        %s362 = scalar_lea.vmem [#allocation11], %s361
        %p363 = scmp.lt.s32.totalorder %s32, 0
        %s364 = scalar_select %p363, %s32, 0
        %s365 = scalar_lea.vmem %s4, %s364
        %p366 = scmp.eq.s32.totalorder %s33, 0
        // Predicated region
        $region57: #{tpu_custom_call.1} parent=39 // pred_check
          %p367 = pneg %p366
        $region58: #{tpu_custom_call.1} parent=39 // pred_check_branch
          %369 = sbr.rel (%p367) target = $region60
        $region59: #{tpu_custom_call.1} parent=39 // pred_region
          %vm370 = vcmask 253952
          %371 = vst.msk [vmem:[#allocation2] sm:$0x1] %vm370, 0.0
        $region60: #{tpu_custom_call.1} parent=39 // pred_fallthru
          _
        %v372 = vld [vmem:[%s311] sm:$0xff]
        %v373 = vld [vmem:[#allocation8] sm:$0xff]
        %v374 = vld [vmem:[#allocation8 + $0x8] sm:$0xff]
        %v375 = vld [vmem:[#allocation8 + $0x10] sm:$0xff]
        %v376 = vld [vmem:[#allocation8 + $0x18] sm:$0xff]
        %vm377 = vcmask 261120
        %v379 = vsel %vm377, %v372, 0
        %381 = vmatprep.subr.mxu0 0.0
        %382 = vmatpush1.msra.mxu0 %v373
        %383 = vmatprep.subr.mxu0 0.0
        %384 = vmatpush1.msra.mxu0 %v374
        %385 = vmatprep.subr.mxu0 0.0
        %386 = vmatpush1.msra.mxu0 %v375
        %387 = vmatprep.subr.mxu0 0.0
        %388 = vmatpush1.msra.mxu0 %v376
        %389 = vmatprep.subr.mxu0 0.0
        %390 = vmatpush1.msra.mxu0 0.0
        %391 = vmatprep.subr.mxu0 0.0
        %392 = vmatpush1.msra.mxu0 0.0
        %393 = vmatprep.subr.mxu0 0.0
        %394 = vmatpush1.msra.mxu0 0.0
        %395 = vmatprep.subr.mxu0 0.0
        %396 = vmatpush1.msra.mxu0 0.0
        %397 = vmatprep.subr.mxu0 0.0
        %398 = vmatpush1.msra.mxu0 0.0
        %399 = vmatprep.subr.mxu0 0.0
        %400 = vmatpush1.msra.mxu0 0.0
        %401 = vmatprep.subr.mxu0 0.0
        %402 = vmatpush1.msra.mxu0 0.0
        %403 = vmatprep.subr.mxu0 0.0
        %404 = vmatpush1.msra.mxu0 0.0
        %405 = vmatprep.subr.mxu0 0.0
        %406 = vmatpush1.msra.mxu0 0.0
        %407 = vmatprep.subr.mxu0 0.0
        %408 = vmatpush1.msra.mxu0 0.0
        %409 = vmatprep.subr.mxu0 0.0
        %410 = vmatpush1.msra.mxu0 0.0
        %411 = vmatprep.subr.mxu0 0.0
        %412 = vmatpush1.msra.mxu0 0.0
        %413 = vmatprep.subr.mxu0 0.0
        %414 = vmatpush1.msra.mxu0 0.0
        %415 = vmatprep.subr.mxu0 0.0
        %416 = vmatpush1.msra.mxu0 0.0
        %417 = vmatprep.subr.mxu0 0.0
        %418 = vmatpush1.msra.mxu0 0.0
        %419 = vmatprep.subr.mxu0 0.0
        %420 = vmatpush1.msra.mxu0 0.0
        %421 = vmatprep.subr.mxu0 0.0
        %422 = vmatpush1.msra.mxu0 0.0
        %423 = vmatprep.subr.mxu0 0.0
        %424 = vmatpush1.msra.mxu0 0.0
        %425 = vmatprep.subr.mxu0 0.0
        %426 = vmatpush1.msra.mxu0 0.0
        %427 = vmatprep.subr.mxu0 0.0
        %428 = vmatpush1.msra.mxu0 0.0
        %429 = vmatprep.subr.mxu0 0.0
        %430 = vmatpush1.msra.mxu0 0.0
        %431 = vmatprep.subr.mxu0 0.0
        %432 = vmatpush1.msra.mxu0 0.0
        %433 = vmatprep.subr.mxu0 0.0
        %434 = vmatpush1.msra.mxu0 0.0
        %435 = vmatprep.subr.mxu0 0.0
        %436 = vmatpush1.msra.mxu0 0.0
        %437 = vmatprep.subr.mxu0 0.0
        %438 = vmatpush1.msra.mxu0 0.0
        %439 = vmatprep.subr.mxu0 0.0
        %440 = vmatpush1.msra.mxu0 0.0
        %441 = vmatprep.subr.mxu0 0.0
        %442 = vmatpush1.msra.mxu0 0.0
        %443 = vmatprep.subr.mxu0 0.0
        %444 = vmatpush1.msra.mxu0 0.0
        %445 = vmatprep.mubr.f32.mxu0 0.0
        %446 = vmatmul.mubr.f32.gmra.mrb[0].mxu0 %v379
        %v447 = vpop.f32.mrb[0].mxu0
        %v448 = vadd.f32 0.0, %v447
        %v449 = vpop.f32.mrb[0].mxu0
        %450 = vdwg.mxu0
        %v451 = vxor.u32 %v448, 2147483648
        %v452 = vmul.f32 %v451, 1.442695
        %v453 = vpow.pop %v452
        %v454 = vadd.f32 %v453, 1.0
        %v455 = vrcp.pop %v454
        %v456 = vmul.f32 1.0, %v455
        %v457 = vld [vmem:[#allocation9] sm:$0xff]
        %v458 = vld [vmem:[#allocation9 + $0x8] sm:$0xff]
        %v459 = vld [vmem:[#allocation9 + $0x10] sm:$0xff]
        %v460 = vld [vmem:[#allocation9 + $0x18] sm:$0xff]
        %461 = vmatprep.subr.mxu0 0.0
        %462 = vmatpush1.msra.mxu0 %v457
        %463 = vmatprep.subr.mxu0 0.0
        %464 = vmatpush1.msra.mxu0 %v458
        %465 = vmatprep.subr.mxu0 0.0
        %466 = vmatpush1.msra.mxu0 %v459
        %467 = vmatprep.subr.mxu0 0.0
        %468 = vmatpush1.msra.mxu0 %v460
        %469 = vmatprep.subr.mxu0 0.0
        %470 = vmatpush1.msra.mxu0 0.0
        %471 = vmatprep.subr.mxu0 0.0
        %472 = vmatpush1.msra.mxu0 0.0
        %473 = vmatprep.subr.mxu0 0.0
        %474 = vmatpush1.msra.mxu0 0.0
        %475 = vmatprep.subr.mxu0 0.0
        %476 = vmatpush1.msra.mxu0 0.0
        %477 = vmatprep.subr.mxu0 0.0
        %478 = vmatpush1.msra.mxu0 0.0
        %479 = vmatprep.subr.mxu0 0.0
        %480 = vmatpush1.msra.mxu0 0.0
        %481 = vmatprep.subr.mxu0 0.0
        %482 = vmatpush1.msra.mxu0 0.0
        %483 = vmatprep.subr.mxu0 0.0
        %484 = vmatpush1.msra.mxu0 0.0
        %485 = vmatprep.subr.mxu0 0.0
        %486 = vmatpush1.msra.mxu0 0.0
        %487 = vmatprep.subr.mxu0 0.0
        %488 = vmatpush1.msra.mxu0 0.0
        %489 = vmatprep.subr.mxu0 0.0
        %490 = vmatpush1.msra.mxu0 0.0
        %491 = vmatprep.subr.mxu0 0.0
        %492 = vmatpush1.msra.mxu0 0.0
        %493 = vmatprep.subr.mxu0 0.0
        %494 = vmatpush1.msra.mxu0 0.0
        %495 = vmatprep.subr.mxu0 0.0
        %496 = vmatpush1.msra.mxu0 0.0
        %497 = vmatprep.subr.mxu0 0.0
        %498 = vmatpush1.msra.mxu0 0.0
        %499 = vmatprep.subr.mxu0 0.0
        %500 = vmatpush1.msra.mxu0 0.0
        %501 = vmatprep.subr.mxu0 0.0
        %502 = vmatpush1.msra.mxu0 0.0
        %503 = vmatprep.subr.mxu0 0.0
        %504 = vmatpush1.msra.mxu0 0.0
        %505 = vmatprep.subr.mxu0 0.0
        %506 = vmatpush1.msra.mxu0 0.0
        %507 = vmatprep.subr.mxu0 0.0
        %508 = vmatpush1.msra.mxu0 0.0
        %509 = vmatprep.subr.mxu0 0.0
        %510 = vmatpush1.msra.mxu0 0.0
        %511 = vmatprep.subr.mxu0 0.0
        %512 = vmatpush1.msra.mxu0 0.0
        %513 = vmatprep.subr.mxu0 0.0
        %514 = vmatpush1.msra.mxu0 0.0
        %515 = vmatprep.subr.mxu0 0.0
        %516 = vmatpush1.msra.mxu0 0.0
        %517 = vmatprep.subr.mxu0 0.0
        %518 = vmatpush1.msra.mxu0 0.0
        %519 = vmatprep.subr.mxu0 0.0
        %520 = vmatpush1.msra.mxu0 0.0
        %521 = vmatprep.subr.mxu0 0.0
        %522 = vmatpush1.msra.mxu0 0.0
        %523 = vmatprep.subr.mxu0 0.0
        %524 = vmatpush1.msra.mxu0 0.0
        %525 = vmatprep.mubr.f32.mxu0 0.0
        %526 = vmatmul.mubr.f32.gmra.mrb[0].mxu0 %v379
        %v527 = vpop.f32.mrb[0].mxu0
        %v528 = vadd.f32 0.0, %v527
        %v529 = vpop.f32.mrb[0].mxu0
        %530 = vdwg.mxu0
        %v531 = vxor.u32 %v528, 2147483648
        %v532 = vmul.f32 %v531, 1.442695
        %v533 = vpow.pop %v532
        %v534 = vadd.f32 %v533, 1.0
        %v535 = vrcp.pop %v534
        %v536 = vmul.f32 1.0, %v535
        %v537 = vld [vmem:[%s365] sm:$0x1]
        %v539 = vlaneseq
        %v540 = vshrl.u32 %v539, 7
        %v541 = vsub.s32 0, %v540
        %v542 = vrot.slane %v537, %v541
        %v544 = vmul.f32 %v542, %v536
        %v545 = vmul.f32 %v544, 1.442695
        %v546 = vpow.pop %v545
        %v547 = vmul.f32 %v546, %v546
        %v548 = vsub.f32 1.0, %v547
        %v549 = vmax.f32 %v548, 0.0
        %v550 = vrsqrt.pop %v549
        %v551 = vmul.f32 %v549, %v550
        %vm552 = vcmp.eq.f32.partialorder %v549, inf
        %v553 = vsel %vm552, %v549, %v551
        %vm554 = vcmp.eq.f32.partialorder %v549, 0.0
        %v555 = vand.u32 %v549, 2147483648
        %v556 = vsel %vm554, %v555, %v553
        %v557 = vmul.f32 %v556, %v456
        %v558 = vld [vmem:[%s320] sm:$0xff]
        %v559 = vmul.f32 %v557, %v558
        %v560 = vlaneseq
        %v561 = vshrl.u32 %v560, 7
        %vm562 = vcmp.ge.s32.totalorder %v561, 1
        %v563 = vrot.slane %v546, 7
        %v564 = vsel %vm562, %v563, 1.0
        %v565 = vrot.slane %v559, 7
        %v566 = vsel %vm562, %v565, 0.0
        %v567 = vmul.f32 %v546, %v566
        %v568 = vadd.f32 %v559, %v567
        %v569 = vmul.f32 %v546, %v564
        %vm570 = vcmp.ge.s32.totalorder %v561, 2
        %v571 = vrot.slane %v569, 6
        %v572 = vsel %vm570, %v571, 1.0
        %v573 = vrot.slane %v568, 6
        %v574 = vsel %vm570, %v573, 0.0
        %v575 = vmul.f32 %v569, %v574
        %v576 = vadd.f32 %v568, %v575
        %v577 = vmul.f32 %v569, %v572
        %vm578 = vcmp.ge.s32.totalorder %v561, 4
        %v579 = vrot.slane %v577, 4
        %v580 = vsel %vm578, %v579, 1.0
        %v581 = vrot.slane %v576, 4
        %v582 = vsel %vm578, %v581, 0.0
        %v583 = vmul.f32 %v577, %v582
        %v584 = vadd.f32 %v576, %v583
        %v585 = vmul.f32 %v577, %v580
        %v586 = vld [vmem:[#allocation2] sm:$0x1]
        %v588 = vlaneseq
        %v589 = vshrl.u32 %v588, 7
        %v590 = vsub.s32 0, %v589
        %v591 = vrot.slane %v586, %v590
        %v593 = vmul.f32 %v585, %v591
        %v594 = vadd.f32 %v584, %v593
        %vm595 = vcmask 261127
        %596 = vst.msk [vmem:[#allocation2 - $0x7] sm:$0x80] %vm595, %v594
        %597 = vst.msk [vmem:[%s362] sm:$0xff] %vm377, %v594
        %s598 = sand.u32 %s193, 1
        %s599 = scalar_lea.sflag [#allocation5], %s598
        %s600 = sand.u32 %s193, 1
        %s601 = smul.addr %s600, 8
        %s602 = scalar_lea.vmem [#allocation11], %s601
        // Predicated region
        $region61: #{tpu_custom_call.1} parent=39 // pred_check
          %p603 = pneg %p203
        $region62: #{tpu_custom_call.1} parent=39 // pred_check_branch
          %605 = sbr.rel (%p603) target = $region64
        $region63: #{tpu_custom_call.1} parent=39 // pred_region
          %s607 = ssub.s32 128, 128
          %608 = vsyncadd %s599, %s607
          %s609 = sadd.s32 %s32, %s33
          %s610 = sadd.s32 %s609, %s31
          %s611 = smul.addr %s610, 128
          %s612 = scalar_lea.hbm %s5, %s611
          %s614 = sshll.u32 %s602, 4
          %s615 = int_to_ptr.vmem [resolvable:$true] %s614
          %617 = dma.vmem_to_hbm [thread:$0]  %s615, 128, %s612, %s599
        $region64: #{tpu_custom_call.1} parent=39 // pred_fallthru
          _
      $region40: #{tpu_custom_call.1} parent=5 // pred_fallthru
        _
      %p618 = scmp.le.s32.totalorder 2, %s21
      // Predicated region
      $region65: #{tpu_custom_call.1} parent=5 // pred_check
        %p619 = pneg %p618
      $region66: #{tpu_custom_call.1} parent=5 // pred_check_branch
        %621 = sbr.rel (%p619) target = $region68
      $region67: #{tpu_custom_call.1} parent=5 // pred_region
        %s622 = ssub.s32 %s21, 2
        // Predicated region
        $region69: #{tpu_custom_call.1} parent=67 // pred_check
          %p623 = pneg %p209
        $region70: #{tpu_custom_call.1} parent=67 // pred_check_branch
          %625 = sbr.rel (%p623) target = $region72
        $region71: #{tpu_custom_call.1} parent=67 // pred_region
          %s626 = sand.u32 %s194, 1
          %s627 = scalar_lea.sflag [#allocation5], %s626
          %s628 = sand.u32 %s194, 1
          %s629 = smul.addr %s628, 8
          %s630 = scalar_lea.vmem [#allocation11], %s629
          %631 = dma.done %s627, 128
        $region72: #{tpu_custom_call.1} parent=67 // pred_fallthru
          _
      $region68: #{tpu_custom_call.1} parent=5 // pred_fallthru
        _
    $region6: #{tpu_custom_call.1} parent=1 // loop_footer
      %s25 = sadd.s32 1, %s21
    $region7: #{tpu_custom_call.1} parent=1 // loop_footer_branch
      %20 = sbr.rel target = $region3
    $region8: #{tpu_custom_call.1} parent=1 // loop_exit
      _
    %632 = vsyncpa [#allocation4], 1
    %s633 = scalar_lea.sflag [#allocation4], 1
    %634 = vsyncpa %s633, 1
    %635 = vsyncpa [#allocation7], 1
    %s636 = scalar_lea.sflag [#allocation7], 1
    %637 = vsyncpa %s636, 1
    %638 = vsyncpa [#allocation10], 1
    %639 = vsyncpa [#allocation5], 1
    %s640 = scalar_lea.sflag [#allocation5], 1
    %641 = vsyncpa %s640, 1

</llo_original>
